<compile_context>
chip_gen: v7x
topology: tpu7x:2x2x1
jax: 0.10.0
libtpu: 0.0.40
codegen_flags: <defaults>
</compile_context>

<pallas_src>
import functools

import jax
import jax.numpy as jnp
from jax.experimental import pallas as pl
from jax.experimental.pallas import tpu as pltpu

_LANES = 128
_SUBLANE_PACK = 32          # multiple of the sublane pack for f32/bf16/int8
_MAX_BLOCK_ROWS = 2048      # 2048*128*4B = 1 MiB f32 per input block


def _patch_mse_kernel(p_ref, t_ref, o_ref):
    # p_ref / t_ref: (block_rows, 128) lane-dense VMEM tiles of the gathered,
    # zero-padded selected rows.  Padding is identical in both inputs, so it
    # contributes 0 to the squared-difference sum.
    d = p_ref[...].astype(jnp.float32) - t_ref[...].astype(jnp.float32)
    # Per-lane partial sums -> lane-dense (1, 128) unmasked store.
    o_ref[...] = jnp.sum(d * d, axis=0, keepdims=True)


def patch_loss(predictions, targets):
    """PatchLoss with an MSE(mean) delegate. predictions/targets: (N, C, H, W)."""
    assert predictions.shape == targets.shape
    N, C, H, W = predictions.shape
    c_sel = H // 2 + 1   # indexes the channel dim (faithful to the torch code)
    y_sel = W // 2 + 1   # indexes the height dim
    # Same constraint the torch fancy-indexing implicitly requires:
    assert c_sel < C and y_sel < H, "shape too small for mask[:, h//2+1, w//2+1]"

    # Wrapper-level single-row gather (static-index slice, pure XLA): only the
    # (N, W) selected row of each tensor ever reaches the kernel.
    p_rows = predictions[:, c_sel, y_sel, :].reshape(-1)   # (N*W,)
    t_rows = targets[:, c_sel, y_sel, :].reshape(-1)

    total = N * W
    rows_needed = pl.cdiv(total, _LANES)
    num_steps = max(1, pl.cdiv(rows_needed, _MAX_BLOCK_ROWS))
    block_rows = pl.cdiv(rows_needed, num_steps)
    block_rows = pl.cdiv(block_rows, _SUBLANE_PACK) * _SUBLANE_PACK
    padded_total = num_steps * block_rows * _LANES

    pad = padded_total - total
    if pad:
        p_rows = jnp.pad(p_rows, (0, pad))
        t_rows = jnp.pad(t_rows, (0, pad))
    p2 = p_rows.reshape(num_steps * block_rows, _LANES)   # lane-dense slab
    t2 = t_rows.reshape(num_steps * block_rows, _LANES)

    itemsize = jnp.dtype(predictions.dtype).itemsize
    cost = pl.CostEstimate(
        flops=3 * total,                                   # sub, mul, add per element
        transcendentals=0,
        bytes_accessed=2 * padded_total * itemsize + num_steps * _LANES * 4,
    )

    partial = pl.pallas_call(
        _patch_mse_kernel,
        out_shape=jax.ShapeDtypeStruct((num_steps, _LANES), jnp.float32),
        grid=(num_steps,),
        in_specs=[pl.BlockSpec((block_rows, _LANES), lambda i: (i, 0)),
                  pl.BlockSpec((block_rows, _LANES), lambda i: (i, 0))],
        out_specs=pl.BlockSpec((1, _LANES), lambda i: (i, 0)),
        compiler_params=pltpu.CompilerParams(
            dimension_semantics=("parallel",)),
        cost_estimate=cost,
    )(p2, t2)

    # MSE(mean) over the full masked (N, C, H, W) tensors: only the selected
    # rows are nonzero, so scale the squared-diff sum by 1/(N*C*H*W).
    inv_total = jnp.float32(1.0 / float(N * C * H * W))
    return jnp.sum(partial) * inv_total


def _patch_loss_ref(predictions, targets):
    """Pure-JAX reference mirroring the PyTorch code line by line."""
    N, C, H, W = predictions.shape
    mask = jnp.zeros_like(predictions)
    mask = mask.at[:, H // 2 + 1, W // 2 + 1].set(1)
    mp = predictions * mask
    mt = targets * mask
    return jnp.mean((mp - mt) ** 2)


if __name__ == "__main__":
    # Small shapes consistent with the forward: need C > H//2+1 and H > W//2+1.
    N, C, H, W = 2, 16, 16, 16
    key = jax.random.PRNGKey(0)
    kp, kt = jax.random.split(key)
    predictions = jax.random.normal(kp, (N, C, H, W), dtype=jnp.float32)
    targets = jax.random.normal(kt, (N, C, H, W), dtype=jnp.float32)

    loss = jax.block_until_ready(patch_loss(predictions, targets))
    ref = _patch_loss_ref(predictions, targets)
    assert jnp.allclose(loss, ref, rtol=1e-5, atol=1e-6), (loss, ref)
    print("KERNEL_OK")
</pallas_src>

<mosaic_0001>
module attributes {stable_mosaic.version = 11 : i64} {
  func.func @_patch_mse_kernel(%arg0: i32, %arg1: memref<32x128xf32, #tpu.memory_space<vmem>>, %arg2: memref<32x128xf32, #tpu.memory_space<vmem>>, %arg3: memref<1x128xf32, #tpu.memory_space<vmem>>) attributes {dimension_semantics = [#tpu.dimension_semantics<parallel>], iteration_bounds = array<i64: 1>, scalar_prefetch = 0 : i64, scratch_operands = 0 : i64, tpu.core_type = #tpu.core_type<tc>, window_params = [{transform_indices = @transform_0, window_bounds = array<i64: 32, 128>}, {transform_indices = @transform_1, window_bounds = array<i64: 32, 128>}, {transform_indices = @transform_2, window_bounds = array<i64: 1, 128>}]} {
    %c0 = arith.constant 0 : index
    %c0_0 = arith.constant 0 : index
    %0 = vector.load %arg1[%c0, %c0_0] : memref<32x128xf32, #tpu.memory_space<vmem>>, vector<32x128xf32>
    %c0_1 = arith.constant 0 : index
    %c0_2 = arith.constant 0 : index
    %1 = vector.load %arg2[%c0_1, %c0_2] : memref<32x128xf32, #tpu.memory_space<vmem>>, vector<32x128xf32>
    %2 = arith.subf %0, %1 : vector<32x128xf32>
    %3 = arith.mulf %2, %2 : vector<32x128xf32>
    %cst = arith.constant dense<0.000000e+00> : vector<128xf32>
    %4 = vector.multi_reduction <add>, %3, %cst [0] : vector<32x128xf32> to vector<128xf32>
    %5 = vector.shape_cast %4 : vector<128xf32> to vector<1x128xf32>
    %c0_3 = arith.constant 0 : index
    %c0_4 = arith.constant 0 : index
    %6 = vector.load %arg3[%c0_3, %c0_4] : memref<1x128xf32, #tpu.memory_space<vmem>>, vector<1x128xf32>
    tpu.vector_store %arg3[%c0_3, %c0_4], %5 {strides = array<i32>} : memref<1x128xf32, #tpu.memory_space<vmem>>, vector<1x128xf32>,
    return
  }
  func.func @transform_0(%arg0: i32) -> (i32, i32) {
    %c0_i32 = arith.constant 0 : i32
    %c0_i32_0 = arith.constant 0 : i32
    return %arg0, %c0_i32 : i32, i32
  }
  func.func @transform_1(%arg0: i32) -> (i32, i32) {
    %c0_i32 = arith.constant 0 : i32
    %c0_i32_0 = arith.constant 0 : i32
    return %arg0, %c0_i32 : i32, i32
  }
  func.func @transform_2(%arg0: i32) -> (i32, i32) {
    %c0_i32 = arith.constant 0 : i32
    %c0_i32_0 = arith.constant 0 : i32
    return %arg0, %c0_i32 : i32, i32
  }
}

</mosaic_0001>

<llo_original>
// kernel: tpu_custom_call.1
$region0: #{tpu_custom_call.1}
  #allocation0 [shape = 'u32[]', space=smem, size = 0x4, offset = 0x4, fixed_abs, tag = 'smem constant byte address 0x4 - core index']
  #allocation1 [shape = 'u32[144,128]{1,0:T(1,128)}', space=vmem, size = 0x12000, scoped, tag = 'internal scratch']
  %s0 = inlined_call_operand.hbm [shape: f32[32,128], index: 0, kind: input, shape index: {}]
  %s1 = inlined_call_operand.hbm [shape: f32[32,128], index: 1, kind: input, shape index: {}]
  %s2 = inlined_call_operand.hbm [shape: f32[1,128], index: 2, kind: output, shape index: {}]
  %s3 = sld [smem:[#allocation0]]
  $region26: #{tpu_custom_call.1} parent=0
    _
  %s5 = ssub.s32 1, %s3
  %s6 = scalar_select 0, %s5, %s3
  $region1: #{tpu_custom_call.1} parent=0
    #allocation2 [shape = 'u8[16384]{0}', space=vmem, size = 0x4000, scoped, tag = 'input window, operand 0, single buffered']
    #allocation3 [shape = 's32[1]{0}', space=sflag, size = 0x4, scoped, tag = 'scoped memory for tpu_custom_call.1']
    #allocation4 [shape = 's32[1]{0}', space=sflag, size = 0x4, scoped, tag = 'scoped memory for tpu_custom_call.1']
    #allocation5 [shape = 'u8[16384]{0}', space=vmem, size = 0x4000, scoped, tag = 'input window, operand 1, single buffered']
    #allocation6 [shape = 's32[1]{0}', space=sflag, size = 0x4, scoped, tag = 'scoped memory for tpu_custom_call.1']
    #allocation7 [shape = 'u8[512]{0}', space=vmem, size = 0x400, scoped, tag = 'output window, operand 0, single buffered']
    %7 = vsyncpa [#allocation3], 0
    %8 = vsyncpa [#allocation6], 0
    %9 = vsyncpa [#allocation4], 0
    // Predicated region
    $region2: #{tpu_custom_call.1} parent=1 // pred_check
      _
    $region3: #{tpu_custom_call.1} parent=1 // pred_check_branch
      %11 = sbr.rel (0) target = $region5
    $region4: #{tpu_custom_call.1} parent=1 // pred_region
      %s13 = ssub.s32 512, 512
      %14 = vsyncadd [#allocation3], %s13
      %s15 = sshll.u32 [#allocation2], 4
      %s16 = int_to_ptr.vmem [resolvable:$true] %s15
      %21 = dma.hbm_to_vmem [thread:$0]  %s0, 512, %s16, [#allocation3], 128, 128, 8
    $region5: #{tpu_custom_call.1} parent=1 // pred_fallthru
      _
    // Predicated region
    $region6: #{tpu_custom_call.1} parent=1 // pred_check
      _
    $region7: #{tpu_custom_call.1} parent=1 // pred_check_branch
      %23 = sbr.rel (0) target = $region9
    $region8: #{tpu_custom_call.1} parent=1 // pred_region
      %s25 = ssub.s32 512, 512
      %26 = vsyncadd [#allocation6], %s25
      %s27 = sshll.u32 [#allocation5], 4
      %s28 = int_to_ptr.vmem [resolvable:$true] %s27
      %33 = dma.hbm_to_vmem [thread:$0]  %s1, 512, %s28, [#allocation6], 128, 128, 8
    $region9: #{tpu_custom_call.1} parent=1 // pred_fallthru
      _
    // Predicated region
    $region10: #{tpu_custom_call.1} parent=1 // pred_check
      _
    $region11: #{tpu_custom_call.1} parent=1 // pred_check_branch
      %35 = sbr.rel (0) target = $region13
    $region12: #{tpu_custom_call.1} parent=1 // pred_region
      %36 = dma.done [#allocation3], 512
    $region13: #{tpu_custom_call.1} parent=1 // pred_fallthru
      _
    // Predicated region
    $region14: #{tpu_custom_call.1} parent=1 // pred_check
      _
    $region15: #{tpu_custom_call.1} parent=1 // pred_check_branch
      %38 = sbr.rel (0) target = $region17
    $region16: #{tpu_custom_call.1} parent=1 // pred_region
      %39 = dma.done [#allocation6], 512
    $region17: #{tpu_custom_call.1} parent=1 // pred_fallthru
      _
    %v40 = vld [vmem:[#allocation2] sm:$0xff]
    %v41 = vld [vmem:[#allocation2 + $0x8] sm:$0xff]
    %v42 = vld [vmem:[#allocation2 + $0x10] sm:$0xff]
    %v43 = vld [vmem:[#allocation2 + $0x18] sm:$0xff]
    %v44 = vld [vmem:[#allocation5] sm:$0xff]
    %v45 = vld [vmem:[#allocation5 + $0x8] sm:$0xff]
    %v46 = vld [vmem:[#allocation5 + $0x10] sm:$0xff]
    %v47 = vld [vmem:[#allocation5 + $0x18] sm:$0xff]
    %v48 = vsub.f32 %v40, %v44
    %v49 = vsub.f32 %v41, %v45
    %v50 = vsub.f32 %v42, %v46
    %v51 = vsub.f32 %v43, %v47
    %v52 = vmul.f32 %v48, %v48
    %v53 = vmul.f32 %v49, %v49
    %v54 = vmul.f32 %v50, %v50
    %v55 = vmul.f32 %v51, %v51
    %v56 = vadd.f32 %v52, %v53
    %v57 = vadd.f32 %v56, %v54
    %v58 = vadd.f32 %v57, %v55
    %v59 = vrot.slane %v58, 4
    %v60 = vadd.f32 %v58, %v59
    %v61 = vrot.slane %v60, 2
    %v62 = vadd.f32 %v60, %v61
    %v63 = vrot.slane %v62, 1
    %v64 = vadd.f32 %v62, %v63
    %65 = vst [vmem:[#allocation7] sm:$0x1] %v64
    // Predicated region
    $region18: #{tpu_custom_call.1} parent=1 // pred_check
      _
    $region19: #{tpu_custom_call.1} parent=1 // pred_check_branch
      %67 = sbr.rel (0) target = $region21
    $region20: #{tpu_custom_call.1} parent=1 // pred_region
      %s69 = ssub.s32 16, 16
      %70 = vsyncadd [#allocation4], %s69
      %s72 = sshll.u32 [#allocation7], 4
      %s73 = int_to_ptr.vmem [resolvable:$true] %s72
      %75 = dma.vmem_to_hbm [thread:$0]  %s73, 16, %s2, [#allocation4]
    $region21: #{tpu_custom_call.1} parent=1 // pred_fallthru
      _
    // Predicated region
    $region22: #{tpu_custom_call.1} parent=1 // pred_check
      _
    $region23: #{tpu_custom_call.1} parent=1 // pred_check_branch
      %77 = sbr.rel (0) target = $region25
    $region24: #{tpu_custom_call.1} parent=1 // pred_region
      %78 = dma.done [#allocation4], 16
    $region25: #{tpu_custom_call.1} parent=1 // pred_fallthru
      _
    %79 = vsyncpa [#allocation3], 1
    %80 = vsyncpa [#allocation6], 1
    %81 = vsyncpa [#allocation4], 1

</llo_original>
